<compile_context>
chip_gen: v5e
topology: v5e:2x2
jax: 0.10.0
libtpu: 0.0.40
codegen_flags: <defaults>
</compile_context>

<pallas_src>
import functools
import math

import jax
import jax.numpy as jnp
from jax import lax
from jax.experimental import pallas as pl
from jax.experimental.pallas import tpu as pltpu


# ---------------------------------------------------------------------------
# Helpers
# ---------------------------------------------------------------------------
def _pick_tile(dim, candidates):
    """Largest candidate that evenly divides `dim`, else None."""
    for c in candidates:
        if c <= dim and dim % c == 0:
            return c
    return None


def _vmem_limit_bytes():
    """~3/4 of physical VMEM (≈96 MiB on 128 MiB parts, ≈48 MiB on v7x)."""
    try:
        cap = int(pltpu.get_tpu_info().vmem_capacity_bytes)
    except Exception:
        return 48 * 1024 * 1024
    return max(32 * 1024 * 1024, min(cap * 3 // 4, 112 * 1024 * 1024))


def _bf16_eup_ok():
    """bf16 exp only on chips with a bf16 EUP (v6e / v7x); not v5e or older."""
    try:
        kind = jax.devices()[0].device_kind.lower()
    except Exception:
        return False
    return ("v6" in kind) or ("v7" in kind)


# ---------------------------------------------------------------------------
# Kernel 1: K-tiled linear  y = x @ W + b  (f32 accumulator, bias at last k)
# ---------------------------------------------------------------------------
def _linear_kernel(x_ref, w_ref, b_ref, o_ref, acc_ref):
    @pl.when(pl.program_id(2) == 0)
    def _():
        acc_ref[...] = jnp.zeros_like(acc_ref)

    acc_ref[...] += jnp.dot(x_ref[...], w_ref[...],
                            preferred_element_type=jnp.float32)

    @pl.when(pl.program_id(2) == pl.num_programs(2) - 1)
    def _():
        o_ref[...] = (acc_ref[...] + b_ref[...]).astype(o_ref.dtype)


def _linear_tiles(M, K, N, in_bytes, out_bytes, budget):
    tm = _pick_tile(M, (1024, 512, 256, 128, 64, 32, 16, 8))
    m_pad = 0
    if tm is None:                       # pad rows to a multiple of 128
        tm = 128
        m_pad = (-M) % tm
    tn = _pick_tile(N, (512, 256, 128)) or N
    tk = _pick_tile(K, (2048, 1024, 512, 256, 128)) or K

    def footprint(tm_, tn_, tk_):
        return (2 * (tm_ * tk_ + tk_ * tn_) * in_bytes     # x, w double-buffered
                + 2 * tm_ * tn_ * out_bytes                # out double-buffered
                + tm_ * tn_ * 4 + 2 * max(tn_, 128) * 4)   # f32 acc + bias

    # Shrink K tile first (preserves weight reuse of large tm*tn on v7x).
    while footprint(tm, tn, tk) > budget and tk > 128 and tk % 2 == 0:
        tk //= 2
    while footprint(tm, tn, tk) > budget and tm > 8 and tm % 2 == 0:
        tm //= 2
    return tm, tn, tk, m_pad


def _linear(x2d, w, b, *, out_dtype, vmem_limit):
    M0, K = x2d.shape
    K2, N = w.shape
    assert K == K2
    in_bytes = jnp.dtype(x2d.dtype).itemsize
    out_bytes = jnp.dtype(out_dtype).itemsize
    tm, tn, tk, m_pad = _linear_tiles(M0, K, N, in_bytes, out_bytes,
                                      budget=int(vmem_limit * 0.7))
    if m_pad:
        x2d = jnp.pad(x2d, ((0, m_pad), (0, 0)))
    M = M0 + m_pad

    out = pl.pallas_call(
        _linear_kernel,
        out_shape=jax.ShapeDtypeStruct((M, N), out_dtype),
        grid=(M // tm, N // tn, K // tk),
        in_specs=[
            pl.BlockSpec((tm, tk), lambda i, j, k: (i, k)),    # x row tile
            pl.BlockSpec((tk, tn), lambda i, j, k: (k, j)),    # weight tile
            pl.BlockSpec((1, tn), lambda i, j, k: (0, j)),     # bias tile (f32)
        ],
        out_specs=pl.BlockSpec((tm, tn), lambda i, j, k: (i, j)),
        scratch_shapes=[pltpu.VMEM((tm, tn), jnp.float32)],
        compiler_params=pltpu.CompilerParams(
            dimension_semantics=("parallel", "parallel", "arbitrary"),
            vmem_limit_bytes=vmem_limit),
    )(x2d, w, b.reshape(1, -1).astype(jnp.float32))
    if m_pad:
        out = out[:M0]
    return out


# ---------------------------------------------------------------------------
# Kernel 2: flash attention on the (B, S, 3, H, D) qkv slab, head-blocked
# ---------------------------------------------------------------------------
def _pick_head_block(H, tq, tk, D, in_bytes, out_bytes, budget):
    """Largest head block (<=16 heads, sublane-friendly) fitting the budget."""
    Dp = max(D, 128)                       # lane padding of VMEM buffers
    cand = [h for h in range(min(H, 16), 0, -1)
            if H % h == 0 and (h == H or h % 8 == 0)]
    if not cand:
        cand = [H]

    def footprint(hb):
        return (2 * (tq + 2 * tk) * hb * Dp * in_bytes   # q,k,v double-buffered
                + 2 * tq * hb * Dp * out_bytes           # out double-buffered
                + tq * hb * Dp * 4                       # f32 acc scratch
                + 2 * tq * max(hb, 128) * 4              # m, l scratch
                + 2 * tq * tk * 4)                       # live f32 score/p temps

    for hb in cand:
        if footprint(hb) <= budget:
            return hb
    return cand[-1]


def _flash_attn_kernel(q_ref, k_ref, v_ref, o_ref, m_sc, l_sc, acc_sc, *,
                       causal, tq, tk, hb, exp_dtype):
    qi = pl.program_id(1)
    ki = pl.program_id(3)

    @pl.when(ki == 0)
    def _():
        m_sc[...] = jnp.full_like(m_sc, -jnp.inf)
        l_sc[...] = jnp.zeros_like(l_sc)
        acc_sc[...] = jnp.zeros_like(acc_sc)

    def _step(masked):
        if masked:
            # Mask built once per step (diagonal tiles only), shared by heads.
            row = qi * tq + lax.broadcasted_iota(jnp.int32, (tq, tk), 0)
            col = ki * tk + lax.broadcasted_iota(jnp.int32, (tq, tk), 1)
            above_diag = col > row
        for h in range(hb):                                  # statically unrolled
            q_h = q_ref[:, h, :]                             # (tq, D), pre-scaled
            k_h = k_ref[:, h, :]                             # (tk, D)
            v_h = v_ref[:, h, :]                             # (tk, D)
            s = lax.dot_general(q_h, k_h, (((1,), (1,)), ((), ())),
                                preferred_element_type=jnp.float32)   # q @ k.T
            if masked:
                s = jnp.where(above_diag, -jnp.inf, s)
            m_prev = m_sc[:, h:h + 1]                        # (tq, 1) f32
            m_new = jnp.maximum(m_prev, s.max(axis=-1, keepdims=True))
            alpha = jnp.exp(m_prev - m_new)                  # (tq, 1) f32
            p = jnp.exp((s - m_new).astype(exp_dtype))       # bf16 exp on v6e/v7x
            l_sc[:, h:h + 1] = alpha * l_sc[:, h:h + 1] + jnp.sum(
                p.astype(jnp.float32), axis=-1, keepdims=True)
            acc_sc[h] = alpha * acc_sc[h] + lax.dot_general(
                p.astype(v_h.dtype), v_h, (((1,), (0,)), ((), ())),
                preferred_element_type=jnp.float32)          # (tq, D) f32
            m_sc[:, h:h + 1] = m_new

    if causal:
        # Below-diagonal tiles need no mask; diagonal tiles are masked; tiles
        # strictly above the diagonal are skipped (and were never DMA'd thanks
        # to the clamped k/v index_map).  ki==0 is always executed, so alpha
        # never sees -inf - (-inf).
        pl.when(ki < qi)(lambda: _step(False))
        pl.when(ki == qi)(lambda: _step(True))
    else:
        _step(False)

    @pl.when(ki == pl.num_programs(3) - 1)
    def _():
        for h in range(hb):
            inv_l = pl.reciprocal(l_sc[:, h:h + 1], approx=True)   # EUP vrcp
            o_ref[:, h, :] = (acc_sc[h] * inv_l).astype(o_ref.dtype)


def _flash_attention(qkv, *, causal, exp_dtype, vmem_limit):
    """qkv: (B, S, 3, H, D) slab straight from in_proj. Returns (B, S, H, D)."""
    B, S, three, H, D = qkv.shape
    assert three == 3
    tq = _pick_tile(S, (512, 256, 128, 64, 32, 16, 8))
    if tq is None:
        # TODO(synk): pad S to a sublane-friendly multiple with a masked tail
        # instead of one full-S block for awkward sequence lengths.
        tq = S
    tk = tq                       # diagonal-tile / clamping logic assumes tq == tk
    itemsize = jnp.dtype(qkv.dtype).itemsize
    hb = _pick_head_block(H, tq, tk, D, itemsize, itemsize,
                          budget=int(vmem_limit * 0.7))

    kernel = functools.partial(_flash_attn_kernel, causal=causal,
                               tq=tq, tk=tk, hb=hb, exp_dtype=exp_dtype)

    if causal:
        kv_blk = lambda i, j: jnp.minimum(i, j)   # never fetch fully-masked tiles
    else:
        kv_blk = lambda i, j: j

    grid = (B, S // tq, H // hb, S // tk)
    return pl.pallas_call(
        kernel,
        out_shape=jax.ShapeDtypeStruct((B, S, H, D), qkv.dtype),
        grid=grid,
        in_specs=[
            pl.BlockSpec((None, tq, None, hb, D),
                         lambda b, i, h, j: (b, i, 0, h, 0)),            # Q
            pl.BlockSpec((None, tk, None, hb, D),
                         lambda b, i, h, j: (b, kv_blk(i, j), 1, h, 0)),  # K
            pl.BlockSpec((None, tk, None, hb, D),
                         lambda b, i, h, j: (b, kv_blk(i, j), 2, h, 0)),  # V
        ],
        # Output in (B, S, H, D) == (B, S, E): out_proj needs no transpose,
        # and the HBM writeback is a contiguous (tq, hb*D) slab.
        out_specs=pl.BlockSpec((None, tq, hb, D),
                               lambda b, i, h, j: (b, i, h, 0)),
        scratch_shapes=[
            pltpu.VMEM((tq, hb), jnp.float32),        # running max  m
            pltpu.VMEM((tq, hb), jnp.float32),        # running sum  l
            pltpu.VMEM((hb, tq, D), jnp.float32),     # running numerator
        ],
        compiler_params=pltpu.CompilerParams(
            dimension_semantics=("parallel", "parallel", "parallel", "arbitrary"),
            vmem_limit_bytes=vmem_limit),
    )(qkv, qkv, qkv)


# ---------------------------------------------------------------------------
# Full module forward
# ---------------------------------------------------------------------------
def self_attention_pallas(x, w_in, b_in, w_out, b_out, *, n_heads,
                          causal=False, compute_dtype=jnp.bfloat16):
    B, S, E = x.shape
    assert E % n_heads == 0
    d_head = E // n_heads
    out_dtype = x.dtype
    vmem_limit = _vmem_limit_bytes()
    exp_dtype = (jnp.bfloat16
                 if (jnp.dtype(compute_dtype) == jnp.dtype(jnp.bfloat16)
                     and _bf16_eup_ok())
                 else jnp.float32)

    # Fold 1/sqrt(d_head) into the Q columns of in_proj (one-time, wrapper).
    scale = 1.0 / math.sqrt(d_head)
    col_scale = jnp.concatenate([
        jnp.full((E,), scale, dtype=jnp.float32),
        jnp.ones((2 * E,), dtype=jnp.float32)])
    w_in_s = (w_in.astype(jnp.float32) * col_scale[None, :]).astype(compute_dtype)
    b_in_s = b_in.astype(jnp.float32) * col_scale

    xc = x.astype(compute_dtype)
    w_out_c = w_out.astype(compute_dtype)

    # ---- in_proj: (B*S, E) @ (E, 3E) + b, f32 accumulation ------------------
    qkv = _linear(xc.reshape(B * S, E), w_in_s, b_in_s,
                  out_dtype=compute_dtype, vmem_limit=vmem_limit)
    # Free contiguous reshape (no transpose): (B, S, 3, H, D).
    qkv = qkv.reshape(B, S, 3, n_heads, d_head)

    # ---- flash attention; output already laid out as (B, S, H, D) -----------
    ctx = _flash_attention(qkv, causal=causal, exp_dtype=exp_dtype,
                           vmem_limit=vmem_limit)

    # ---- out_proj (free reshape, no head-merge transpose) -------------------
    out = _linear(ctx.reshape(B * S, E), w_out_c, b_out,
                  out_dtype=out_dtype, vmem_limit=vmem_limit)
    return out.reshape(B, S, E)


def self_attention_ref(x, w_in, b_in, w_out, b_out, *, n_heads, causal=False):
    """Pure-JAX reference mirroring the PyTorch forward (f32)."""
    B, S, E = x.shape
    d_head = E // n_heads
    qkv = x @ w_in + b_in                                   # (B, S, 3E)
    q, k, v = jnp.split(qkv, 3, axis=-1)

    def heads(t):
        return t.reshape(B, S, n_heads, d_head).transpose(0, 2, 1, 3)

    q, k, v = heads(q), heads(k), heads(v)
    weight = jnp.einsum("bhqd,bhkd->bhqk", q, k)
    if causal:
        mask = jnp.triu(jnp.ones((S, S), dtype=bool), k=1)
        weight = jnp.where(mask, -jnp.inf, weight)
    weight = weight / math.sqrt(d_head)
    weight = jax.nn.softmax(weight, axis=-1)
    out = jnp.einsum("bhqk,bhkd->bhqd", weight, v)
    out = out.transpose(0, 2, 1, 3).reshape(B, S, E)
    return out @ w_out + b_out


if __name__ == "__main__":
    # Small shapes consistent with the module: batch=2, seq=8, d_embeddings=32,
    # n_heads=4 (d_head=8).
    B, S, E, H = 2, 8, 32, 4

    key = jax.random.PRNGKey(0)
    kx, k1, k2, k3, k4 = jax.random.split(key, 5)

    x = jax.random.normal(kx, (B, S, E), dtype=jnp.float32)
    w_in = jax.random.normal(k1, (E, 3 * E), dtype=jnp.float32) / math.sqrt(E)
    b_in = jax.random.normal(k2, (3 * E,), dtype=jnp.float32) * 0.01
    w_out = jax.random.normal(k3, (E, E), dtype=jnp.float32) / math.sqrt(E)
    b_out = jax.random.normal(k4, (E,), dtype=jnp.float32) * 0.01

    for causal in (False, True):
        ref = self_attention_ref(x, w_in, b_in, w_out, b_out,
                                 n_heads=H, causal=causal)

        # f32 compute path (tight check).
        out_f32 = self_attention_pallas(x, w_in, b_in, w_out, b_out,
                                        n_heads=H, causal=causal,
                                        compute_dtype=jnp.float32)
        out_f32 = jax.block_until_ready(out_f32)
        assert out_f32.shape == (B, S, E)
        assert jnp.allclose(out_f32, ref, atol=5e-3, rtol=5e-3), (
            f"f32 mismatch (causal={causal})")

        # bf16 compute path (default / performance path; looser tolerance).
        out_bf16 = self_attention_pallas(x, w_in, b_in, w_out, b_out,
                                         n_heads=H, causal=causal,
                                         compute_dtype=jnp.bfloat16)
        out_bf16 = jax.block_until_ready(out_bf16)
        assert out_bf16.shape == (B, S, E)
        assert jnp.allclose(out_bf16.astype(jnp.float32), ref,
                            atol=7e-2, rtol=7e-2), (
            f"bf16 mismatch (causal={causal})")

    print("KERNEL_OK")
</pallas_src>

<mosaic_0001>
module attributes {stable_mosaic.version = 11 : i64} {
  func.func @_linear_kernel(%arg0: i32, %arg1: i32, %arg2: i32, %arg3: memref<16x32xf32, #tpu.memory_space<vmem>>, %arg4: memref<32x96xf32, #tpu.memory_space<vmem>>, %arg5: memref<1x96xf32, #tpu.memory_space<vmem>>, %arg6: memref<16x96xf32, #tpu.memory_space<vmem>>, %arg7: memref<16x96xf32, #tpu.memory_space<vmem>>) attributes {dimension_semantics = [#tpu.dimension_semantics<parallel>, #tpu.dimension_semantics<parallel>, #tpu.dimension_semantics<arbitrary>], iteration_bounds = array<i64: 1, 1, 1>, scalar_prefetch = 0 : i64, scratch_operands = 1 : i64, tpu.core_type = #tpu.core_type<tc>, window_params = [{transform_indices = @transform_0, window_bounds = array<i64: 16, 32>}, {transform_indices = @transform_1, window_bounds = array<i64: 32, 96>}, {transform_indices = @transform_2, window_bounds = array<i64: 1, 96>}, {transform_indices = @transform_3, window_bounds = array<i64: 16, 96>}]} {
    %c0_i32 = arith.constant 0 : i32
    %0 = arith.cmpi eq, %arg2, %c0_i32 : i32
    %1 = arith.extui %0 : i1 to i32
    %c0_i32_0 = arith.constant 0 : i32
    %2 = arith.cmpi ne, %1, %c0_i32_0 : i32
    scf.if %2 {
      %cst_10 = arith.constant 0.000000e+00 : f32
      %12 = vector.broadcast %cst_10 : f32 to vector<16x96xf32>
      %c0_11 = arith.constant 0 : index
      %c0_12 = arith.constant 0 : index
      %13 = vector.load %arg7[%c0_11, %c0_12] : memref<16x96xf32, #tpu.memory_space<vmem>>, vector<16x96xf32>
      tpu.vector_store %arg7[%c0_11, %c0_12], %12 {strides = array<i32>} : memref<16x96xf32, #tpu.memory_space<vmem>>, vector<16x96xf32>,
    } else {
    }
    %c0 = arith.constant 0 : index
    %c0_1 = arith.constant 0 : index
    %3 = vector.load %arg7[%c0, %c0_1] : memref<16x96xf32, #tpu.memory_space<vmem>>, vector<16x96xf32>
    %c0_2 = arith.constant 0 : index
    %c0_3 = arith.constant 0 : index
    %4 = vector.load %arg3[%c0_2, %c0_3] : memref<16x32xf32, #tpu.memory_space<vmem>>, vector<16x32xf32>
    %c0_4 = arith.constant 0 : index
    %c0_5 = arith.constant 0 : index
    %5 = vector.load %arg4[%c0_4, %c0_5] : memref<32x96xf32, #tpu.memory_space<vmem>>, vector<32x96xf32>
    %cst = arith.constant dense<0.000000e+00> : vector<16x96xf32>
    %6 = tpu.matmul %4, %5, %cst {dimension_numbers = #tpu.dot_dimension_numbers<[1], [0], [0], [1], [0, 0, 1, 1], [], []>} : vector<16x32xf32>, vector<32x96xf32>, vector<16x96xf32> -> vector<16x96xf32>
    %7 = arith.addf %3, %6 : vector<16x96xf32>
    %c0_6 = arith.constant 0 : index
    %c0_7 = arith.constant 0 : index
    %8 = vector.load %arg7[%c0_6, %c0_7] : memref<16x96xf32, #tpu.memory_space<vmem>>, vector<16x96xf32>
    tpu.vector_store %arg7[%c0_6, %c0_7], %7 {strides = array<i32>} : memref<16x96xf32, #tpu.memory_space<vmem>>, vector<16x96xf32>,
    %c0_i32_8 = arith.constant 0 : i32
    %9 = arith.cmpi eq, %arg2, %c0_i32_8 : i32
    %10 = arith.extui %9 : i1 to i32
    %c0_i32_9 = arith.constant 0 : i32
    %11 = arith.cmpi ne, %10, %c0_i32_9 : i32
    scf.if %11 {
      %c0_10 = arith.constant 0 : index
      %c0_11 = arith.constant 0 : index
      %12 = vector.load %arg7[%c0_10, %c0_11] : memref<16x96xf32, #tpu.memory_space<vmem>>, vector<16x96xf32>
      %c0_12 = arith.constant 0 : index
      %c0_13 = arith.constant 0 : index
      %13 = vector.load %arg5[%c0_12, %c0_13] : memref<1x96xf32, #tpu.memory_space<vmem>>, vector<1x96xf32>
      %14 = vector.broadcast %13 : vector<1x96xf32> to vector<16x96xf32>
      %15 = arith.addf %12, %14 : vector<16x96xf32>
      %c0_14 = arith.constant 0 : index
      %c0_15 = arith.constant 0 : index
      %16 = vector.load %arg6[%c0_14, %c0_15] : memref<16x96xf32, #tpu.memory_space<vmem>>, vector<16x96xf32>
      tpu.vector_store %arg6[%c0_14, %c0_15], %15 {strides = array<i32>} : memref<16x96xf32, #tpu.memory_space<vmem>>, vector<16x96xf32>,
    } else {
    }
    return
  }
  func.func @transform_0(%arg0: i32, %arg1: i32, %arg2: i32) -> (i32, i32) {
    %c0_i32 = arith.constant 0 : i32
    return %arg0, %arg2 : i32, i32
  }
  func.func @transform_1(%arg0: i32, %arg1: i32, %arg2: i32) -> (i32, i32) {
    %c0_i32 = arith.constant 0 : i32
    return %arg2, %arg1 : i32, i32
  }
  func.func @transform_2(%arg0: i32, %arg1: i32, %arg2: i32) -> (i32, i32) {
    %c0_i32 = arith.constant 0 : i32
    %c0_i32_0 = arith.constant 0 : i32
    return %c0_i32, %arg1 : i32, i32
  }
  func.func @transform_3(%arg0: i32, %arg1: i32, %arg2: i32) -> (i32, i32) {
    %c0_i32 = arith.constant 0 : i32
    return %arg0, %arg1 : i32, i32
  }
}

</mosaic_0001>

<llo_original>
// kernel: tpu_custom_call.1
$region0: #{tpu_custom_call.1}
  #allocation0 [shape = 'u32[]', space=smem, size = 0x4, offset = 0x4, fixed_abs, tag = 'smem constant byte address 0x4 - core index']
  #allocation1 [shape = 'u32[72,128]{1,0:T(1,128)}', space=vmem, size = 0x9000, scoped, tag = 'internal scratch']
  #allocation2 [shape = 'f32[16,96]{1,0:T(8,128)}', space=vmem, size = 0x2000, scoped, tag = 'scratch operand']
  %s0 = inlined_call_operand.hbm [shape: f32[16,32], index: 0, kind: input, shape index: {}]
  %s1 = inlined_call_operand.hbm [shape: f32[32,96], index: 1, kind: input, shape index: {}]
  %s2 = inlined_call_operand.vmem [shape: f32[1,96], index: 2, kind: input, shape index: {}]
  %s3 = inlined_call_operand.hbm [shape: f32[16,96], index: 3, kind: output, shape index: {}]
  %s4 = sld [smem:[#allocation0]]
  $region38: #{tpu_custom_call.1} parent=0
    _
  %s6 = ssub.s32 1, %s4
  %s7 = scalar_select 0, %s6, %s4
  $region1: #{tpu_custom_call.1} parent=0
    #allocation3 [shape = 'u8[8192]{0}', space=vmem, size = 0x2000, scoped, tag = 'input window, operand 0, single buffered']
    #allocation4 [shape = 's32[1]{0}', space=sflag, size = 0x4, scoped, tag = 'scoped memory for tpu_custom_call.1']
    #allocation5 [shape = 's32[1]{0}', space=sflag, size = 0x4, scoped, tag = 'scoped memory for tpu_custom_call.1']
    #allocation6 [shape = 'u8[16384]{0}', space=vmem, size = 0x4000, scoped, tag = 'input window, operand 1, single buffered']
    #allocation7 [shape = 's32[1]{0}', space=sflag, size = 0x4, scoped, tag = 'scoped memory for tpu_custom_call.1']
    #allocation8 [shape = 'u8[8192]{0}', space=vmem, size = 0x2000, scoped, tag = 'output window, operand 0, single buffered']
    %8 = vsyncpa [#allocation4], 0
    %9 = vsyncpa [#allocation7], 0
    %10 = vsyncpa [#allocation5], 0
    // Predicated region
    $region2: #{tpu_custom_call.1} parent=1 // pred_check
      _
    $region3: #{tpu_custom_call.1} parent=1 // pred_check_branch
      %12 = sbr.rel (0) target = $region5
    $region4: #{tpu_custom_call.1} parent=1 // pred_region
      %14 = vsyncadd [#allocation4], 0
      %s15 = sshll.u32 %s0, 4
      %s16 = int_to_ptr.hbm [resolvable:$true] %s15
      %s17 = sshll.u32 [#allocation3], 4
      %s18 = int_to_ptr.vmem [resolvable:$true] %s17
      %23 = dma.hbm_to_vmem [thread:$0]  %s16, 256, %s18, [#allocation4], 128, 128, 8
    $region5: #{tpu_custom_call.1} parent=1 // pred_fallthru
      _
    // Predicated region
    $region6: #{tpu_custom_call.1} parent=1 // pred_check
      _
    $region7: #{tpu_custom_call.1} parent=1 // pred_check_branch
      %25 = sbr.rel (0) target = $region9
    $region8: #{tpu_custom_call.1} parent=1 // pred_region
      %27 = vsyncadd [#allocation7], 0
      %s28 = sshll.u32 %s1, 4
      %s29 = int_to_ptr.hbm [resolvable:$true] %s28
      %s30 = sshll.u32 [#allocation6], 4
      %s31 = int_to_ptr.vmem [resolvable:$true] %s30
      %36 = dma.hbm_to_vmem [thread:$0]  %s29, 512, %s31, [#allocation7], 128, 128, 8
    $region9: #{tpu_custom_call.1} parent=1 // pred_fallthru
      _
    // Predicated region
    $region10: #{tpu_custom_call.1} parent=1 // pred_check
      _
    $region11: #{tpu_custom_call.1} parent=1 // pred_check_branch
      %38 = sbr.rel (0) target = $region13
    $region12: #{tpu_custom_call.1} parent=1 // pred_region
      _
    $region13: #{tpu_custom_call.1} parent=1 // pred_fallthru
      _
    // Predicated region
    $region14: #{tpu_custom_call.1} parent=1 // pred_check
      _
    $region15: #{tpu_custom_call.1} parent=1 // pred_check_branch
      %40 = sbr.rel (0) target = $region17
    $region16: #{tpu_custom_call.1} parent=1 // pred_region
      %42 = dma.done [#allocation4], 256
    $region17: #{tpu_custom_call.1} parent=1 // pred_fallthru
      _
    // Predicated region
    $region18: #{tpu_custom_call.1} parent=1 // pred_check
      _
    $region19: #{tpu_custom_call.1} parent=1 // pred_check_branch
      %44 = sbr.rel (0) target = $region21
    $region20: #{tpu_custom_call.1} parent=1 // pred_region
      %46 = dma.done [#allocation7], 512
    $region21: #{tpu_custom_call.1} parent=1 // pred_fallthru
      _
    %p47 = scmp.eq.s32.totalorder 0, 0
    // Predicated region
    $region22: #{tpu_custom_call.1} parent=1 // pred_check
      %p48 = pneg %p47
    $region23: #{tpu_custom_call.1} parent=1 // pred_check_branch
      %50 = sbr.rel (%p48) target = $region25
    $region24: #{tpu_custom_call.1} parent=1 // pred_region
      %vm51 = vcmask 785408
      %52 = vst.msk [vmem:[#allocation2] sm:$0xff] %vm51, 0.0
      %53 = vst.msk [vmem:[#allocation2 + $0x8] sm:$0xff] %vm51, 0.0
    $region25: #{tpu_custom_call.1} parent=1 // pred_fallthru
      _
    %v54 = vld [vmem:[#allocation2] sm:$0xff]
    %v55 = vld [vmem:[#allocation2 + $0x8] sm:$0xff]
    %v56 = vld [vmem:[#allocation3] sm:$0xff]
    %v57 = vld [vmem:[#allocation3 + $0x8] sm:$0xff]
    %v58 = vld [vmem:[#allocation6] sm:$0xff]
    %v59 = vld [vmem:[#allocation6 + $0x8] sm:$0xff]
    %v60 = vld [vmem:[#allocation6 + $0x10] sm:$0xff]
    %v61 = vld [vmem:[#allocation6 + $0x18] sm:$0xff]
    %vm62 = vcmask 261120
    %v64 = vsel %vm62, %v56, 0
    %v67 = vsel %vm62, %v57, 0
    %69 = vmatpush.msra.mxu0 0.0
    %70 = vmatpush.msra.mxu0 0.0
    %71 = vmatpush.msra.mxu0 0.0
    %72 = vmatpush.msra.mxu0 0.0
    %73 = vmatpush.msra.mxu0 0.0
    %74 = vmatpush.msra.mxu0 0.0
    %75 = vmatpush.msra.mxu0 0.0
    %76 = vmatpush.msra.mxu0 0.0
    %77 = vmatpush.msra.mxu0 0.0
    %78 = vmatpush.msra.mxu0 0.0
    %79 = vmatpush.msra.mxu0 0.0
    %80 = vmatpush.msra.mxu0 0.0
    %81 = vmatpush.msra.mxu0 %v61
    %82 = vmatpush.msra.mxu0 %v60
    %83 = vmatpush.msra.mxu0 %v59
    %84 = vmatpush.msra.mxu0 %v58
    %85 = vmatmul.f32.gmra.mxu0 %v64
    %v86 = vpop.f32.mrf.mxu0
    %v87 = vadd.f32 0.0, %v86
    %88 = vmatmul.f32.gmra.mxu0 %v67
    %v89 = vpop.f32.mrf.mxu0
    %v90 = vadd.f32 0.0, %v89
    %91 = vdwg.mxu0
    %v92 = vadd.f32 %v54, %v87
    %v93 = vadd.f32 %v55, %v90
    %vm94 = vcmask 785408
    %95 = vst.msk [vmem:[#allocation2] sm:$0xff] %vm94, %v92
    %96 = vst.msk [vmem:[#allocation2 + $0x8] sm:$0xff] %vm94, %v93
    // Predicated region
    $region26: #{tpu_custom_call.1} parent=1 // pred_check
      %p97 = pneg %p47
    $region27: #{tpu_custom_call.1} parent=1 // pred_check_branch
      %99 = sbr.rel (%p97) target = $region29
    $region28: #{tpu_custom_call.1} parent=1 // pred_region
      %v100 = vld [vmem:[#allocation2] sm:$0xff]
      %v101 = vld [vmem:[#allocation2 + $0x8] sm:$0xff]
      %v102 = vld [vmem:[%s2] sm:$0x1]
      %v104 = vperm.slane %v102, 0
      %v106 = vadd.f32 %v100, %v104
      %v107 = vadd.f32 %v101, %v104
      %108 = vst.msk [vmem:[#allocation8] sm:$0xff] %vm94, %v106
      %109 = vst.msk [vmem:[#allocation8 + $0x8] sm:$0xff] %vm94, %v107
    $region29: #{tpu_custom_call.1} parent=1 // pred_fallthru
      _
    // Predicated region
    $region30: #{tpu_custom_call.1} parent=1 // pred_check
      _
    $region31: #{tpu_custom_call.1} parent=1 // pred_check_branch
      %111 = sbr.rel (0) target = $region33
    $region32: #{tpu_custom_call.1} parent=1 // pred_region
      %113 = vsyncadd [#allocation5], 0
      %s114 = sshll.u32 [#allocation8], 4
      %s115 = int_to_ptr.vmem [resolvable:$true] %s114
      %s116 = sshll.u32 %s3, 4
      %s117 = int_to_ptr.hbm [resolvable:$true] %s116
      %122 = dma.vmem_to_hbm [thread:$0]  %s115, 256, %s117, [#allocation5], 128, 128, 8
    $region33: #{tpu_custom_call.1} parent=1 // pred_fallthru
      _
    // Predicated region
    $region34: #{tpu_custom_call.1} parent=1 // pred_check
      _
    $region35: #{tpu_custom_call.1} parent=1 // pred_check_branch
      %124 = sbr.rel (0) target = $region37
    $region36: #{tpu_custom_call.1} parent=1 // pred_region
      %126 = dma.done [#allocation5], 256
    $region37: #{tpu_custom_call.1} parent=1 // pred_fallthru
      _
    %127 = vsyncpa [#allocation4], 1
    %128 = vsyncpa [#allocation7], 1
    %129 = vsyncpa [#allocation5], 1

</llo_original>
